<compile_context>
chip_gen: v5e
topology: v5e:2x2
jax: 0.10.0
libtpu: 0.0.40
codegen_flags: <defaults>
</compile_context>

<pallas_src>
import functools

import jax
import jax.numpy as jnp
from jax.experimental import pallas as pl
from jax.experimental.pallas import tpu as pltpu

_LANE = 128
_SUBLANE = 8
_MIB = 1024 * 1024


def _round_up(x, m):
    return (x + m - 1) // m * m


# ----------------------------------------------------------------------------
# Hardware-aware budgets
# ----------------------------------------------------------------------------
def _hw_info():
    """Return (vmem_budget_bytes, num_tensorcores) for the current TPU part."""
    vmem_cap = 64 * _MIB            # conservative default: v7x per-core VMEM
    try:
        vmem_cap = int(pltpu.get_tpu_info().vmem_capacity_bytes)
    except Exception:
        # Capability probe only (not a kernel failure); keep the safe default.
        pass
    # Heuristic: <=64 MiB per-core VMEM => v7x-class part with 2 TensorCores.
    num_cores = 2 if vmem_cap <= 64 * _MIB else 1
    if vmem_cap >= 100 * _MIB:      # v5e / v6e: 128 MiB physical VMEM
        budget = min(vmem_cap - 24 * _MIB, 112 * _MIB)
    else:                           # v7x: 64 MiB; leave headroom for Mosaic scratch
        budget = min(52 * _MIB, vmem_cap - 12 * _MIB)
    return max(budget, 8 * _MIB), num_cores


# ----------------------------------------------------------------------------
# Tiling heuristics
# ----------------------------------------------------------------------------
def _choose_tiles(M, K, Np, in_item, w_item, out_item, *, budget, num_cores,
                  k_split=None):
    """Pick (tm, tk, K_pad, n_k)."""
    # ---- K axis: keep the weight resident, or stream it (K-tiled)? ----
    if k_split is not None and int(k_split) > 1:
        tk = max(_LANE, _round_up(pl.cdiv(K, int(k_split)), _LANE))
    elif 2 * _round_up(K, _SUBLANE) * Np * w_item > budget // 3:
        # A resident (double-buffered) weight would eat >1/3 of VMEM: stream it
        # along K instead (keeps tm large; LN needs the full Np row, so Np is
        # never tiled).
        tk = max(_LANE, ((budget // 3) // (2 * Np * w_item)) // _LANE * _LANE)
    else:
        tk = None
    if tk is None or tk >= K:
        tk, K_pad, n_k = K, K, 1
    else:
        K_pad = _round_up(K, tk)
        n_k = K_pad // tk

    # ---- M axis: biggest row tile that fits the VMEM budget ----
    def vmem_est(t):
        x_b = 2 * t * tk * in_item              # double-buffered input tile
        o_b = 2 * t * Np * out_item             # double-buffered output tile
        w_b = 2 * tk * Np * w_item              # (double-buffered) weight block
        p_b = 2 * _SUBLANE * Np * 4             # packed params, sublane-padded
        acc = t * Np * 4 if n_k > 1 else 0      # f32 accumulator scratch
        return x_b + o_b + w_b + p_b + acc

    tm = 2048                                   # amortizes ~0.35us per-step overhead
    while tm > _SUBLANE and vmem_est(tm) > budget:
        tm = max(_round_up(tm // 2, _SUBLANE), _SUBLANE)

    # Don't tile rows more finely than the available work:
    #  * 1 TensorCore (v5e/v6e): one step covering all rows beats many tiny steps.
    #  * 2 TensorCores (v7x):    split into balanced halves so both cores work.
    rows = _round_up(M, _SUBLANE)
    if num_cores >= 2:
        rows = max(_round_up(pl.cdiv(M, num_cores), _SUBLANE), _SUBLANE)
    tm = max(min(tm, rows), _SUBLANE)
    return tm, tk, K_pad, n_k


# ----------------------------------------------------------------------------
# Pallas kernels: fused Linear (x @ W + b) + LayerNorm(gamma, beta)
# ----------------------------------------------------------------------------
def _ln_epilogue(y, params, o_ref, *, eps, n_valid):
    # y: (tm, Np) f32 after the matmul; padded columns (>= n_valid) are exactly
    # zero because the padded weight/bias columns are zero, so plain sums over
    # the padded lane width equal the sums over the real channels.
    p = params.astype(jnp.float32)
    bias, gamma, beta = p[0:1, :], p[1:2, :], p[2:3, :]
    y = y + bias
    inv_n = 1.0 / n_valid
    mean = jnp.sum(y, axis=-1, keepdims=True) * inv_n
    var = jnp.sum(y * y, axis=-1, keepdims=True) * inv_n - mean * mean
    out = (y - mean) * jax.lax.rsqrt(var + eps)            # rsqrt -> EUP slot
    # Padded gamma/beta columns are zero -> padded output lanes stay zero.
    o_ref[...] = (out * gamma + beta).astype(o_ref.dtype)


def _proj_norm_kernel(x_ref, w_ref, p_ref, o_ref, *, eps, n_valid):
    # Resident-weight path: full K per step.
    y = jnp.dot(x_ref[...], w_ref[...], preferred_element_type=jnp.float32)
    _ln_epilogue(y, p_ref[...], o_ref, eps=eps, n_valid=n_valid)


def _proj_norm_kernel_ktiled(x_ref, w_ref, p_ref, o_ref, acc_ref, *, eps, n_valid):
    # Streamed-weight path: trailing "arbitrary" K axis, f32 accumulator scratch.
    k = pl.program_id(1)

    @pl.when(k == 0)
    def _init():
        acc_ref[...] = jnp.zeros_like(acc_ref)

    acc_ref[...] += jnp.dot(x_ref[...], w_ref[...],
                            preferred_element_type=jnp.float32)

    @pl.when(k == pl.num_programs(1) - 1)
    def _finalize():
        _ln_epilogue(acc_ref[...], p_ref[...], o_ref, eps=eps, n_valid=n_valid)


# ----------------------------------------------------------------------------
# Fused projection + LayerNorm wrapper
# ----------------------------------------------------------------------------
def merge_proj_norm(x2d, w_t, params, *, n_valid_out, eps, out_dtype, k_split=None):
    """LayerNorm(x2d @ w_t + bias) * gamma + beta, fused in one Pallas kernel.

    x2d:    (M, K) flattened patches (bf16 or f32).
    w_t:    (K, Np) pre-transposed weight, lane-padded (Np % 128 == 0, zero cols).
    params: (3, Np) packed [bias; gamma; beta] in f32 (zeros past n_valid_out).
    Returns (M, n_valid_out) in out_dtype.
    """
    M, K = x2d.shape
    Kw, Np = w_t.shape
    assert Kw == K, (Kw, K)
    assert Np % _LANE == 0 and 0 < n_valid_out <= Np
    assert params.shape == (3, Np)

    budget, num_cores = _hw_info()
    in_item = x2d.dtype.itemsize
    w_item = w_t.dtype.itemsize
    out_item = jnp.dtype(out_dtype).itemsize
    tm, tk, K_pad, n_k = _choose_tiles(M, K, Np, in_item, w_item, out_item,
                                       budget=budget, num_cores=num_cores,
                                       k_split=k_split)

    M_pad = _round_up(M, tm)
    if M_pad != M:
        # Padded rows see x = 0 -> y = bias -> finite LN garbage; sliced off below
        # (nothing reduces over rows, so they never contaminate real outputs).
        x2d = jnp.pad(x2d, ((0, M_pad - M), (0, 0)))
    if K_pad != K:
        # Zero-padded K columns / weight rows contribute nothing to the matmul.
        x2d = jnp.pad(x2d, ((0, 0), (0, K_pad - K)))
        w_t = jnp.pad(w_t, ((0, K_pad - K), (0, 0)))

    if n_k == 1:
        kernel = functools.partial(_proj_norm_kernel, eps=eps, n_valid=n_valid_out)
        grid = (M_pad // tm,)
        in_specs = [
            pl.BlockSpec((tm, K_pad), lambda i: (i, 0)),    # x tile (pipelined)
            pl.BlockSpec((K_pad, Np), lambda i: (0, 0)),    # resident weight
            pl.BlockSpec((3, Np), lambda i: (0, 0)),        # packed bias/gamma/beta
        ]
        out_specs = pl.BlockSpec((tm, Np), lambda i: (i, 0))   # lane-dense output
        scratch = ()
        dims = ("parallel",)
        w_reads = 1
    else:
        kernel = functools.partial(_proj_norm_kernel_ktiled, eps=eps,
                                   n_valid=n_valid_out)
        grid = (M_pad // tm, n_k)
        in_specs = [
            pl.BlockSpec((tm, tk), lambda i, k: (i, k)),    # x tile
            pl.BlockSpec((tk, Np), lambda i, k: (k, 0)),    # streamed weight block
            pl.BlockSpec((3, Np), lambda i, k: (0, 0)),     # packed params
        ]
        out_specs = pl.BlockSpec((tm, Np), lambda i, k: (i, 0))
        scratch = (pltpu.VMEM((tm, Np), jnp.float32),)      # f32 accumulator
        dims = ("parallel", "arbitrary")
        w_reads = M_pad // tm                               # weight re-streamed per M tile

    cost = pl.CostEstimate(
        flops=2 * M_pad * K_pad * Np,
        transcendentals=M_pad,                              # one rsqrt per row
        bytes_accessed=int(in_item * M_pad * K_pad
                           + w_item * w_reads * K_pad * Np
                           + 4 * 3 * Np
                           + out_item * M_pad * Np),
    )

    y_pad = pl.pallas_call(
        kernel,
        out_shape=jax.ShapeDtypeStruct((M_pad, Np), out_dtype),
        grid_spec=pltpu.PrefetchScalarGridSpec(
            num_scalar_prefetch=0,
            grid=grid,
            in_specs=in_specs,
            out_specs=out_specs,
            scratch_shapes=scratch,
        ),
        compiler_params=pltpu.CompilerParams(
            dimension_semantics=dims,
            vmem_limit_bytes=int(budget),
        ),
        cost_estimate=cost,
    )(x2d, w_t, params)

    # TODO(synk): when out_channels << 128 the lane padding costs up to 4x output
    # write traffic; if such a config is store-bound, switch to masked stores.
    return y_pad[:M, :n_valid_out]


# ----------------------------------------------------------------------------
# Functional forward (jitted per module configuration)
# ----------------------------------------------------------------------------
def _merge4d_forward(x, w_kernel, params_kernel, *, kernel_size, out_channels,
                     eps, compute_dtype, k_split):
    b, c, Nf, Df, Hf, Wf = x.shape
    nk, dk, hk, wk = kernel_size
    n, d, h, w = Nf // nk, Df // dk, Hf // hk, Wf // wk

    # rearrange 'b c (n nk) (d dk) (h hk) (w wk) -> b n d h w (nk dk hk wk c)'
    # TODO(synk): fold this patch-extraction transpose into the Pallas input
    # pipeline (multi-axis grid + Blocked/Squeezed BlockSpec on the 6-D tensor)
    # to remove one full-tensor HBM round trip; kept as an XLA transpose for now.
    xr = x.reshape(b, c, n, nk, d, dk, h, hk, w, wk)
    xr = jnp.transpose(xr, (0, 2, 4, 6, 8, 3, 5, 7, 9, 1))
    K = nk * dk * hk * wk * c
    # bf16 activations for the MXU (the cast fuses with the transpose in XLA).
    x2d = xr.reshape(b * n * d * h * w, K).astype(compute_dtype)

    y2d = merge_proj_norm(x2d, w_kernel, params_kernel,
                          n_valid_out=out_channels, eps=eps,
                          out_dtype=x.dtype, k_split=k_split)

    # TODO(synk): dropout(p=drop_proj) is identity in eval mode
    # (training=False, enable_sampling=False), so it is omitted.

    # rearrange 'b n d h w c -> b c n d h w' (slice + transpose fuse in XLA)
    y = y2d.reshape(b, n, d, h, w, out_channels)
    return jnp.transpose(y, (0, 5, 1, 2, 3, 4))


# ----------------------------------------------------------------------------
# Merge4d module (JAX / Pallas)
# ----------------------------------------------------------------------------
class Merge4dPallas:
    def __init__(self, in_channels, kernel_size, out_channels=None,
                 drop_proj=0.05, enable_sampling=False, *, key, eps=1e-5,
                 compute_dtype=jnp.bfloat16, k_split=None):
        kernel_size = tuple(kernel_size)
        assert len(kernel_size) == 4
        total = (in_channels * kernel_size[0] * kernel_size[1]
                 * kernel_size[2] * kernel_size[3])
        out_channels = total // 2 if out_channels is None else out_channels

        self.in_channels = in_channels
        self.out_channels = out_channels
        self.kernel_size = kernel_size
        self.drop_proj = drop_proj
        self.enable_sampling = enable_sampling
        self.eps = eps
        self.compute_dtype = compute_dtype

        # PyTorch _init_weights: proj.weight ~ trunc_normal(std=0.02),
        # proj.bias = 0, norm.weight = 1, norm.bias = 0.
        w = jax.random.truncated_normal(key, -2.0, 2.0, (out_channels, total),
                                        jnp.float32) * 0.02
        self.proj_weight = w                                  # (out, total), torch layout
        self.proj_bias = jnp.zeros((out_channels,), jnp.float32)
        self.norm_weight = jnp.ones((out_channels,), jnp.float32)
        self.norm_bias = jnp.zeros((out_channels,), jnp.float32)

        # Kernel-side parameters:
        #  * weight pre-transposed to (total, Np), lane-padded (Np % 128 == 0) with
        #    zero columns so stores stay unmasked and LN stats stay exact, cast ONCE
        #    to the MXU compute dtype (bf16 by default: native on v5e/v6e/v7x and
        #    half the resident-weight VMEM).
        #  * bias / gamma / beta packed into one (3, Np) f32 array: one resident DMA
        #    instead of three; LN math stays in f32.
        Np = _round_up(out_channels, _LANE)
        pad = Np - out_channels
        self.w_kernel = jnp.pad(w.T, ((0, 0), (0, pad))).astype(compute_dtype)
        self.params_kernel = jnp.stack([
            jnp.pad(self.proj_bias, (0, pad)),
            jnp.pad(self.norm_weight, (0, pad)),
            jnp.pad(self.norm_bias, (0, pad)),
        ], axis=0)

        self._fwd = jax.jit(functools.partial(
            _merge4d_forward, kernel_size=self.kernel_size,
            out_channels=self.out_channels, eps=self.eps,
            compute_dtype=self.compute_dtype, k_split=k_split))

    def __call__(self, x):
        return self._fwd(x, self.w_kernel, self.params_kernel)


# ----------------------------------------------------------------------------
# Pure-JAX reference for correctness check
# ----------------------------------------------------------------------------
def _reference(module, x):
    b, c, Nf, Df, Hf, Wf = x.shape
    nk, dk, hk, wk = module.kernel_size
    n, d, h, w = Nf // nk, Df // dk, Hf // hk, Wf // wk
    xr = x.reshape(b, c, n, nk, d, dk, h, hk, w, wk)
    xr = jnp.transpose(xr, (0, 2, 4, 6, 8, 3, 5, 7, 9, 1))
    x2d = xr.reshape(b * n * d * h * w, -1)
    y = jnp.dot(x2d, module.proj_weight.T,
                precision=jax.lax.Precision.HIGHEST) + module.proj_bias
    mean = jnp.mean(y, axis=-1, keepdims=True)
    var = jnp.mean((y - mean) ** 2, axis=-1, keepdims=True)
    y = (y - mean) / jnp.sqrt(var + module.eps)
    y = y * module.norm_weight + module.norm_bias
    y = y.reshape(b, n, d, h, w, module.out_channels)
    return jnp.transpose(y, (0, 5, 1, 2, 3, 4))


if __name__ == "__main__":
    key = jax.random.PRNGKey(0)
    k_w1, k_w2, k_x1, k_x2 = jax.random.split(key, 4)

    kernel_size = (2, 2, 2, 2)
    B, N, D, H, W = 2, 4, 4, 4, 4            # spatial dims divisible by the kernel

    # --- Test 1: f32 compute, resident-weight path (K = 64, out = 32) --------
    in_ch1 = 4
    m1 = Merge4dPallas(in_ch1, kernel_size, key=k_w1, compute_dtype=jnp.float32)
    x1 = jax.random.normal(k_x1, (B, in_ch1, N, D, H, W), jnp.float32)
    out1 = jax.block_until_ready(m1(x1))
    ref1 = _reference(m1, x1)
    assert out1.shape == (B, m1.out_channels, N // 2, D // 2, H // 2, W // 2), out1.shape
    assert jnp.allclose(out1, ref1, atol=1e-3, rtol=1e-3), \
        float(jnp.max(jnp.abs(out1 - ref1)))

    # --- Test 2: bf16 compute, forced K-tiled (streamed weight) path ---------
    in_ch2 = 16                               # K = 256 -> two K tiles of 128
    m2 = Merge4dPallas(in_ch2, kernel_size, key=k_w2, k_split=2)   # bf16 default
    x2 = jax.random.normal(k_x2, (B, in_ch2, N, D, H, W), jnp.float32)
    out2 = jax.block_until_ready(m2(x2))
    ref2 = _reference(m2, x2)
    assert out2.shape == (B, m2.out_channels, N // 2, D // 2, H // 2, W // 2), out2.shape
    # bf16 MXU tolerance (LayerNorm output is O(1)); logic bugs show up as O(1) errors.
    assert jnp.allclose(out2, ref2, atol=5e-2, rtol=5e-2), \
        float(jnp.max(jnp.abs(out2 - ref2)))

    print("KERNEL_OK")
</pallas_src>

<mosaic_0001>
module attributes {stable_mosaic.version = 11 : i64} {
  func.func @_proj_norm_kernel(%arg0: i32, %arg1: memref<16x64xf32, #tpu.memory_space<vmem>>, %arg2: memref<64x128xf32, #tpu.memory_space<vmem>>, %arg3: memref<3x128xf32, #tpu.memory_space<vmem>>, %arg4: memref<16x128xf32, #tpu.memory_space<vmem>>) attributes {dimension_semantics = [#tpu.dimension_semantics<parallel>], iteration_bounds = array<i64: 2>, scalar_prefetch = 0 : i64, scratch_operands = 0 : i64, tpu.core_type = #tpu.core_type<tc>, window_params = [{transform_indices = @transform_0, window_bounds = array<i64: 16, 64>}, {pipeline_mode = #tpu.pipeline_mode<synchronous>, transform_indices = @transform_1, window_bounds = array<i64: 64, 128>}, {pipeline_mode = #tpu.pipeline_mode<synchronous>, transform_indices = @transform_2, window_bounds = array<i64: 3, 128>}, {transform_indices = @transform_3, window_bounds = array<i64: 16, 128>}]} {
    %c0 = arith.constant 0 : index
    %c0_0 = arith.constant 0 : index
    %0 = vector.load %arg1[%c0, %c0_0] : memref<16x64xf32, #tpu.memory_space<vmem>>, vector<16x64xf32>
    %c0_1 = arith.constant 0 : index
    %c0_2 = arith.constant 0 : index
    %1 = vector.load %arg2[%c0_1, %c0_2] : memref<64x128xf32, #tpu.memory_space<vmem>>, vector<64x128xf32>
    %cst = arith.constant dense<0.000000e+00> : vector<16x128xf32>
    %2 = tpu.matmul %0, %1, %cst {dimension_numbers = #tpu.dot_dimension_numbers<[1], [0], [0], [1], [0, 0, 1, 1], [], []>} : vector<16x64xf32>, vector<64x128xf32>, vector<16x128xf32> -> vector<16x128xf32>
    %c0_3 = arith.constant 0 : index
    %c0_4 = arith.constant 0 : index
    %3 = vector.load %arg3[%c0_3, %c0_4] : memref<3x128xf32, #tpu.memory_space<vmem>>, vector<3x128xf32>
    %4 = vector.extract_strided_slice %3 {offsets = [0, 0], sizes = [1, 128], strides = [1, 1]} : vector<3x128xf32> to vector<1x128xf32>
    %5 = vector.extract_strided_slice %3 {offsets = [1, 0], sizes = [1, 128], strides = [1, 1]} : vector<3x128xf32> to vector<1x128xf32>
    %6 = vector.extract_strided_slice %3 {offsets = [2, 0], sizes = [1, 128], strides = [1, 1]} : vector<3x128xf32> to vector<1x128xf32>
    %7 = vector.broadcast %4 : vector<1x128xf32> to vector<16x128xf32>
    %8 = arith.addf %2, %7 : vector<16x128xf32>
    %cst_5 = arith.constant dense<0.000000e+00> : vector<16xf32>
    %9 = vector.multi_reduction <add>, %8, %cst_5 [1] : vector<16x128xf32> to vector<16xf32>
    %10 = vector.shape_cast %9 : vector<16xf32> to vector<16x1xf32>
    %cst_6 = arith.constant 3.125000e-02 : f32
    %11 = vector.broadcast %cst_6 : f32 to vector<16x1xf32>
    %12 = arith.mulf %10, %11 : vector<16x1xf32>
    %13 = arith.mulf %8, %8 : vector<16x128xf32>
    %cst_7 = arith.constant dense<0.000000e+00> : vector<16xf32>
    %14 = vector.multi_reduction <add>, %13, %cst_7 [1] : vector<16x128xf32> to vector<16xf32>
    %15 = vector.shape_cast %14 : vector<16xf32> to vector<16x1xf32>
    %cst_8 = arith.constant 3.125000e-02 : f32
    %16 = vector.broadcast %cst_8 : f32 to vector<16x1xf32>
    %17 = arith.mulf %15, %16 : vector<16x1xf32>
    %18 = arith.mulf %12, %12 : vector<16x1xf32>
    %19 = arith.subf %17, %18 : vector<16x1xf32>
    %20 = vector.broadcast %12 : vector<16x1xf32> to vector<16x128xf32>
    %21 = arith.subf %8, %20 : vector<16x128xf32>
    %cst_9 = arith.constant 9.99999974E-6 : f32
    %22 = vector.broadcast %cst_9 : f32 to vector<16x1xf32>
    %23 = arith.addf %19, %22 : vector<16x1xf32>
    %24 = math.rsqrt %23 : vector<16x1xf32>
    %25 = vector.broadcast %24 : vector<16x1xf32> to vector<16x128xf32>
    %26 = arith.mulf %21, %25 : vector<16x128xf32>
    %27 = vector.broadcast %5 : vector<1x128xf32> to vector<16x128xf32>
    %28 = arith.mulf %26, %27 : vector<16x128xf32>
    %29 = vector.broadcast %6 : vector<1x128xf32> to vector<16x128xf32>
    %30 = arith.addf %28, %29 : vector<16x128xf32>
    %c0_10 = arith.constant 0 : index
    %c0_11 = arith.constant 0 : index
    %31 = vector.load %arg4[%c0_10, %c0_11] : memref<16x128xf32, #tpu.memory_space<vmem>>, vector<16x128xf32>
    tpu.vector_store %arg4[%c0_10, %c0_11], %30 {strides = array<i32>} : memref<16x128xf32, #tpu.memory_space<vmem>>, vector<16x128xf32>,
    return
  }
  func.func @transform_0(%arg0: i32) -> (i32, i32) {
    %c0_i32 = arith.constant 0 : i32
    %c0_i32_0 = arith.constant 0 : i32
    return %arg0, %c0_i32 : i32, i32
  }
  func.func @transform_1(%arg0: i32) -> (i32, i32) {
    %c0_i32 = arith.constant 0 : i32
    %c0_i32_0 = arith.constant 0 : i32
    %c0_i32_1 = arith.constant 0 : i32
    return %c0_i32, %c0_i32_0 : i32, i32
  }
  func.func @transform_2(%arg0: i32) -> (i32, i32) {
    %c0_i32 = arith.constant 0 : i32
    %c0_i32_0 = arith.constant 0 : i32
    %c0_i32_1 = arith.constant 0 : i32
    return %c0_i32, %c0_i32_0 : i32, i32
  }
  func.func @transform_3(%arg0: i32) -> (i32, i32) {
    %c0_i32 = arith.constant 0 : i32
    %c0_i32_0 = arith.constant 0 : i32
    return %arg0, %c0_i32 : i32, i32
  }
}

</mosaic_0001>

<llo_original>
// kernel: _merge4d_forward.1
$region0: #{_merge4d_forward.1}
  #allocation0 [shape = 'u32[]', space=smem, size = 0x4, offset = 0x4, fixed_abs, tag = 'smem constant byte address 0x4 - core index']
  #allocation1 [shape = 'u32[72,128]{1,0:T(1,128)}', space=vmem, size = 0x9000, scoped, tag = 'internal scratch']
  %s0 = inlined_call_operand.vmem [shape: f32[32,64], index: 0, kind: input, shape index: {}]
  %s1 = inlined_call_operand.vmem [shape: f32[64,128], index: 1, kind: input, shape index: {}]
  %s2 = inlined_call_operand.vmem [shape: f32[3,128], index: 2, kind: input, shape index: {}]
  %s3 = inlined_call_operand.hbm [shape: f32[32,128], index: 3, kind: output, shape index: {}]
  %s4 = sld [smem:[#allocation0]]
  $region45: #{_merge4d_forward.1} parent=0
    _
  %s6 = ssub.s32 1, %s4
  %s7 = scalar_select 0, %s6, %s4
  $region1: #{_merge4d_forward.1} parent=0
    #allocation2 [shape = 'u8[16384]{0}', space=vmem, size = 0x4000, scoped, tag = 'output window, operand 0']
    #allocation3 [shape = 's32[2]{0}', space=sflag, size = 0x8, scoped, tag = 'scoped memory for _merge4d_forward.1']
    %8 = vsyncpa [#allocation3], 0
    %s9 = scalar_lea.sflag [#allocation3], 1
    %10 = vsyncpa %s9, 0
    loop: start=0, step=1, limit=4
    $region2: #{_merge4d_forward.1} parent=1 // loop_pre_header
      _
    $region3: #{_merge4d_forward.1} parent=1 // loop_header
      %s12 = sphi 0, %s16
      %p13 = scmp.ge.s32.totalorder %s12, 4
      %s22 = sphi 0, %s24
      %s25 = sphi 0, %s22
      %s26 = sphi 0, %s25
      %s42 = sphi 0, %s26
      %s46 = sphi 0, %s46
      %s48 = sphi 0, %s46
      %s49 = sphi 0, %s48
      %s63 = sphi 0, %s49
      %s67 = sphi 0, %s67
      %s69 = sphi 0, %s67
      %s70 = sphi 0, %s69
      %s84 = sphi 0, %s70
      %s90 = sphi 0, %s92
      %s93 = sphi 0, %s90
      %s94 = sphi 0, %s93
      %s110 = sphi 0, %s94
    $region4: #{_merge4d_forward.1} parent=1 // loop_header_branch
      %15 = sbr.rel (%p13) target = $region8
    $region5: #{_merge4d_forward.1} parent=1 // loop_body
      %s17 = ssub.s32 %s12, 1
      %s18 = ssub.s32 %s12, 2
      %s19 = sadd.s32 %s12, 1
      %s20 = ssub.s32 %s12, %s19
      %p21 = scmp.eq.s32.totalorder %s20, 0
      %s23 = sadd.s32 %s22, 1
      %s24 = scalar_select %p21, %s22, %s23
      %p27 = pneg %p21
      %p28 = scmp.eq.s32.totalorder %s12, 1
      %p29 = por %p27, %p28
      %p30 = scmp.ne.s32.totalorder %s22, %s25
      %p31 = scmp.eq.s32.totalorder %s12, 0
      %p32 = por %p30, %p31
      %p33 = scmp.ne.s32.totalorder %s22, %s25
      %p34 = scmp.eq.s32.totalorder %s17, 1
      %p35 = por %p33, %p34
      %p36 = scmp.ne.s32.totalorder %s25, %s26
      %p37 = scmp.eq.s32.totalorder %s17, 0
      %p38 = por %p36, %p37
      %p39 = scmp.ne.s32.totalorder %s25, %s26
      %p40 = scmp.eq.s32.totalorder %s18, 1
      %p41 = por %p39, %p40
      %p43 = scmp.ne.s32.totalorder %s26, %s42
      %p44 = scmp.eq.s32.totalorder %s18, 0
      %p45 = por %p43, %p44
      %s47 = sadd.s32 %s46, 1
      %p50 = scmp.eq.s32.totalorder %s12, 1
      %p51 = scmp.ne.s32.totalorder %s46, %s48
      %p52 = scmp.eq.s32.totalorder %s12, 0
      %p53 = por %p51, %p52
      %p54 = scmp.ne.s32.totalorder %s46, %s48
      %p55 = scmp.eq.s32.totalorder %s17, 1
      %p56 = por %p54, %p55
      %p57 = scmp.ne.s32.totalorder %s48, %s49
      %p58 = scmp.eq.s32.totalorder %s17, 0
      %p59 = por %p57, %p58
      %p60 = scmp.ne.s32.totalorder %s48, %s49
      %p61 = scmp.eq.s32.totalorder %s18, 1
      %p62 = por %p60, %p61
      %p64 = scmp.ne.s32.totalorder %s49, %s63
      %p65 = scmp.eq.s32.totalorder %s18, 0
      %p66 = por %p64, %p65
      %s68 = sadd.s32 %s67, 1
      %p71 = scmp.eq.s32.totalorder %s12, 1
      %p72 = scmp.ne.s32.totalorder %s67, %s69
      %p73 = scmp.eq.s32.totalorder %s12, 0
      %p74 = por %p72, %p73
      %p75 = scmp.ne.s32.totalorder %s67, %s69
      %p76 = scmp.eq.s32.totalorder %s17, 1
      %p77 = por %p75, %p76
      %p78 = scmp.ne.s32.totalorder %s69, %s70
      %p79 = scmp.eq.s32.totalorder %s17, 0
      %p80 = por %p78, %p79
      %p81 = scmp.ne.s32.totalorder %s69, %s70
      %p82 = scmp.eq.s32.totalorder %s18, 1
      %p83 = por %p81, %p82
      %p85 = scmp.ne.s32.totalorder %s70, %s84
      %p86 = scmp.eq.s32.totalorder %s18, 0
      %p87 = por %p85, %p86
      %s88 = ssub.s32 %s12, %s19
      %p89 = scmp.eq.s32.totalorder %s88, 0
      %s91 = sadd.s32 %s90, 1
      %s92 = scalar_select %p89, %s90, %s91
      %p95 = pneg %p89
      %p96 = scmp.eq.s32.totalorder %s12, 1
      %p97 = por %p95, %p96
      %p98 = scmp.ne.s32.totalorder %s90, %s93
      %p99 = scmp.eq.s32.totalorder %s12, 0
      %p100 = por %p98, %p99
      %p101 = scmp.ne.s32.totalorder %s90, %s93
      %p102 = scmp.eq.s32.totalorder %s17, 1
      %p103 = por %p101, %p102
      %p104 = scmp.ne.s32.totalorder %s93, %s94
      %p105 = scmp.eq.s32.totalorder %s17, 0
      %p106 = por %p104, %p105
      %p107 = scmp.ne.s32.totalorder %s93, %s94
      %p108 = scmp.eq.s32.totalorder %s18, 1
      %p109 = por %p107, %p108
      %p111 = scmp.ne.s32.totalorder %s94, %s110
      %p112 = scmp.eq.s32.totalorder %s18, 0
      %p113 = por %p111, %p112
      %p114 = scmp.le.s32.totalorder 1, %s12
      %p115 = scmp.lt.s32.totalorder %s12, 3
      %p116 = pnand %p114, %p115
      %p117 = pneg %p116
      // Predicated region
      $region9: #{_merge4d_forward.1} parent=5 // pred_check
        _
      $region10: #{_merge4d_forward.1} parent=5 // pred_check_branch
        %119 = sbr.rel (%p116) target = $region12
      $region11: #{_merge4d_forward.1} parent=5 // pred_region
        %s120 = ssub.s32 %s12, 1
        // Predicated region
        $region13: #{_merge4d_forward.1} parent=11 // pred_check
          %p121 = pneg %p59
        $region14: #{_merge4d_forward.1} parent=11 // pred_check_branch
          %123 = sbr.rel (%p121) target = $region16
        $region15: #{_merge4d_forward.1} parent=11 // pred_region
          _
        $region16: #{_merge4d_forward.1} parent=11 // pred_fallthru
          _
        // Predicated region
        $region17: #{_merge4d_forward.1} parent=11 // pred_check
          %p124 = pneg %p80
        $region18: #{_merge4d_forward.1} parent=11 // pred_check_branch
          %126 = sbr.rel (%p124) target = $region20
        $region19: #{_merge4d_forward.1} parent=11 // pred_region
          _
        $region20: #{_merge4d_forward.1} parent=11 // pred_fallthru
          _
      $region12: #{_merge4d_forward.1} parent=5 // pred_fallthru
        _
      %p127 = scmp.lt.s32.totalorder %s12, 2
      // Predicated region
      $region21: #{_merge4d_forward.1} parent=5 // pred_check
        %p128 = pneg %p127
      $region22: #{_merge4d_forward.1} parent=5 // pred_check_branch
        %130 = sbr.rel (%p128) target = $region24
      $region23: #{_merge4d_forward.1} parent=5 // pred_region
        // Predicated region
        $region25: #{_merge4d_forward.1} parent=23 // pred_check
          %p131 = pneg %p32
        $region26: #{_merge4d_forward.1} parent=23 // pred_check_branch
          %133 = sbr.rel (%p131) target = $region28
        $region27: #{_merge4d_forward.1} parent=23 // pred_region
          %s134 = smul.u32 2, %s12
          %p135 = scmp.lt.s32.totalorder %s134, 3
          %s136 = scalar_select %p135, %s134, 3
          %s137 = smul.addr %s136, 8
          %s138 = scalar_lea.vmem %s0, %s137
          %s139 = smul.u32 2, %s12
        $region28: #{_merge4d_forward.1} parent=23 // pred_fallthru
          _
      $region24: #{_merge4d_forward.1} parent=5 // pred_fallthru
        _
      %p140 = scmp.le.s32.totalorder 1, %s12
      %p141 = scmp.lt.s32.totalorder %s12, 3
      %p142 = pnand %p140, %p141
      %p143 = pneg %p142
      // Predicated region
      $region29: #{_merge4d_forward.1} parent=5 // pred_check
        _
      $region30: #{_merge4d_forward.1} parent=5 // pred_check_branch
        %145 = sbr.rel (%p142) target = $region32
      $region31: #{_merge4d_forward.1} parent=5 // pred_region
        %s146 = ssub.s32 %s12, 1
        %s147 = smul.u32 2, %s17
        %p148 = scmp.lt.s32.totalorder %s147, 3
        %s149 = scalar_select %p148, %s147, 3
        %s150 = smul.addr %s149, 8
        %s151 = scalar_lea.vmem %s0, %s150
        %p152 = pneg %p38
        %p153 = pneg %p35
        %p154 = pneg %p59
        %p155 = pneg %p56
        %p156 = pneg %p80
        %p157 = pneg %p77
        %p158 = pneg %p106
        %p159 = pneg %p103
        %s160 = sand.u32 %s93, 1
        %s161 = scalar_lea.sflag [#allocation3], %s160
        %s162 = sand.u32 %s93, 1
        %s163 = smul.addr %s162, 16
        %s164 = scalar_lea.vmem [#allocation2], %s163
        %s165 = smul.u32 2, %s17
        %p166 = scmp.lt.s32.totalorder %s165, 3
        %s167 = scalar_select %p166, %s165, 3
        %s168 = smul.addr %s167, 8
        %s169 = scalar_lea.vmem %s0, %s168
        %s170 = smul.u32 2, %s17
        %s171 = smul.u32 2, %s17
        %v172 = vld [vmem:[%s169] sm:$0xff]
        %v173 = vld [vmem:[%s169 + $0x8] sm:$0xff]
        %v174 = vld [vmem:[%s1] sm:$0xff]
        %v175 = vld [vmem:[%s1 + $0x8] sm:$0xff]
        %v176 = vld [vmem:[%s1 + $0x10] sm:$0xff]
        %v177 = vld [vmem:[%s1 + $0x18] sm:$0xff]
        %v178 = vld [vmem:[%s1 + $0x20] sm:$0xff]
        %v179 = vld [vmem:[%s1 + $0x28] sm:$0xff]
        %v180 = vld [vmem:[%s1 + $0x30] sm:$0xff]
        %v181 = vld [vmem:[%s1 + $0x38] sm:$0xff]
        %v182 = vld [vmem:[%s2] sm:$0x7]
        %v183 = vperm.slane %v182, 0
        %vm184 = vcmask 523264
        %v186 = vsel %vm184, %v172, 0
        %v189 = vsel %vm184, %v173, 0
        %191 = vmatpush.msra.mxu0 0.0
        %192 = vmatpush.msra.mxu0 0.0
        %193 = vmatpush.msra.mxu0 0.0
        %194 = vmatpush.msra.mxu0 0.0
        %195 = vmatpush.msra.mxu0 0.0
        %196 = vmatpush.msra.mxu0 0.0
        %197 = vmatpush.msra.mxu0 0.0
        %198 = vmatpush.msra.mxu0 0.0
        %199 = vmatpush.msra.mxu0 %v181
        %200 = vmatpush.msra.mxu0 %v180
        %201 = vmatpush.msra.mxu0 %v179
        %202 = vmatpush.msra.mxu0 %v178
        %203 = vmatpush.msra.mxu0 %v177
        %204 = vmatpush.msra.mxu0 %v176
        %205 = vmatpush.msra.mxu0 %v175
        %206 = vmatpush.msra.mxu0 %v174
        %207 = vmatmul.f32.gmra.mxu0 %v186
        %v208 = vpop.f32.mrf.mxu0
        %v209 = vadd.f32 %v183, %v208
        %210 = vmatmul.f32.gmra.mxu0 %v189
        %v211 = vpop.f32.mrf.mxu0
        %v212 = vadd.f32 %v183, %v211
        %213 = vdwg.mxu0
        %214 = vadd.xlane.f32.xlu0 %v209
        %v215 = vpop.xlane.xlu0 %214
        %216 = vadd.xlane.f32.xlu0 %v212
        %v217 = vpop.xlane.xlu0 %216
        %v218 = vmul.f32 %v215, 0.03125
        %v219 = vmul.f32 %v217, 0.03125
        %v220 = vmul.f32 %v209, %v209
        %v221 = vmul.f32 %v212, %v212
        %222 = vadd.xlane.f32.xlu0 %v220
        %v223 = vpop.xlane.xlu0 %222
        %224 = vadd.xlane.f32.xlu0 %v221
        %v225 = vpop.xlane.xlu0 %224
        %v226 = vmul.f32 %v223, 0.03125
        %v227 = vmul.f32 %v225, 0.03125
        %v228 = vmul.f32 %v218, %v218
        %v229 = vmul.f32 %v219, %v219
        %v230 = vsub.f32 %v226, %v228
        %v231 = vsub.f32 %v227, %v229
        %v232 = vsub.f32 %v209, %v218
        %v233 = vsub.f32 %v212, %v219
        %v234 = vadd.f32 %v230, 1e-05
        %v235 = vadd.f32 %v231, 1e-05
        %v236 = vrsqrt.pop %v234
        %v237 = vmul.f32 %v236, %v234
        %v238 = vmul.f32 %v237, %v236
        %v239 = vmul.f32 0.5, %v238
        %v240 = vsub.f32 1.5, %v239
        %v241 = vmul.f32 %v236, %v240
        %vm242 = vweird.f32 %v234
        %vm243 = vweird.f32 %v236
        %vm244 = vmor %vm242, %vm243
        %v245 = vsel %vm244, %v236, %v241
        %v246 = vrsqrt.pop %v235
        %v247 = vmul.f32 %v246, %v235
        %v248 = vmul.f32 %v247, %v246
        %v249 = vmul.f32 0.5, %v248
        %v250 = vsub.f32 1.5, %v249
        %v251 = vmul.f32 %v246, %v250
        %vm252 = vweird.f32 %v235
        %vm253 = vweird.f32 %v246
        %vm254 = vmor %vm252, %vm253
        %v255 = vsel %vm254, %v246, %v251
        %v256 = vmul.f32 %v232, %v245
        %v257 = vmul.f32 %v233, %v255
        %v258 = vperm.slane %v182, 1
        %v259 = vmul.f32 %v256, %v258
        %v260 = vmul.f32 %v257, %v258
        %v261 = vperm.slane %v182, 2
        %v262 = vadd.f32 %v259, %v261
        %v263 = vadd.f32 %v260, %v261
        %264 = vst [vmem:[%s164] sm:$0xff] %v262
        %265 = vst [vmem:[%s164 + $0x8] sm:$0xff] %v263
        %s266 = sand.u32 %s93, 1
        %s267 = scalar_lea.sflag [#allocation3], %s266
        %s268 = sand.u32 %s93, 1
        %s269 = smul.addr %s268, 16
        %s270 = scalar_lea.vmem [#allocation2], %s269
        // Predicated region
        $region33: #{_merge4d_forward.1} parent=31 // pred_check
          %p271 = pneg %p103
        $region34: #{_merge4d_forward.1} parent=31 // pred_check_branch
          %273 = sbr.rel (%p271) target = $region36
        $region35: #{_merge4d_forward.1} parent=31 // pred_region
          %s274 = smul.u32 2, %s17
          %276 = vsyncadd %s267, 0
          %s277 = smul.addr %s274, 8
          %s278 = scalar_lea.hbm %s3, %s277
          %s279 = sshll.u32 %s270, 4
          %s280 = int_to_ptr.vmem [resolvable:$true] %s279
          %s281 = sshll.u32 %s278, 4
          %s282 = int_to_ptr.hbm [resolvable:$true] %s281
          %287 = dma.vmem_to_hbm [thread:$0]  %s280, 256, %s282, %s267, 128, 128, 8
        $region36: #{_merge4d_forward.1} parent=31 // pred_fallthru
          _
      $region32: #{_merge4d_forward.1} parent=5 // pred_fallthru
        _
      %p288 = scmp.le.s32.totalorder 2, %s12
      // Predicated region
      $region37: #{_merge4d_forward.1} parent=5 // pred_check
        %p289 = pneg %p288
      $region38: #{_merge4d_forward.1} parent=5 // pred_check_branch
        %291 = sbr.rel (%p289) target = $region40
      $region39: #{_merge4d_forward.1} parent=5 // pred_region
        %s292 = ssub.s32 %s12, 2
        // Predicated region
        $region41: #{_merge4d_forward.1} parent=39 // pred_check
          %p293 = pneg %p109
        $region42: #{_merge4d_forward.1} parent=39 // pred_check_branch
          %295 = sbr.rel (%p293) target = $region44
        $region43: #{_merge4d_forward.1} parent=39 // pred_region
          %s296 = sand.u32 %s94, 1
          %s297 = scalar_lea.sflag [#allocation3], %s296
          %s298 = sand.u32 %s94, 1
          %s299 = smul.addr %s298, 16
          %s300 = scalar_lea.vmem [#allocation2], %s299
          %302 = dma.done %s297, 256
        $region44: #{_merge4d_forward.1} parent=39 // pred_fallthru
          _
      $region40: #{_merge4d_forward.1} parent=5 // pred_fallthru
        _
    $region6: #{_merge4d_forward.1} parent=1 // loop_footer
      %s16 = sadd.s32 1, %s12
    $region7: #{_merge4d_forward.1} parent=1 // loop_footer_branch
      %11 = sbr.rel target = $region3
    $region8: #{_merge4d_forward.1} parent=1 // loop_exit
      _
    %303 = vsyncpa [#allocation3], 1
    %s304 = scalar_lea.sflag [#allocation3], 1
    %305 = vsyncpa %s304, 1

</llo_original>
